<compile_context>
chip_gen: v6e
topology: v6e:2x2x1
jax: 0.10.0
libtpu: 0.0.40
codegen_flags: <defaults>
</compile_context>

<pallas_src>
import jax
import jax.numpy as jnp
from jax.experimental import pallas as pl
from jax.experimental.pallas import tpu as pltpu


# ----------------------------- configuration ------------------------------ #
B = 2                      # batch
L = 16                     # sequence length (power of two -> cheap row % L)
VOCAB = 100                # embedding rows
WORD_DIM = 32              # args.word_dim
POS_NUM = 20               # args.pos_num
POS_DIM = 8                # args.pos_dim
D = WORD_DIM + 2 * POS_DIM             # concat feature dim = 48
HIDDEN = 16                # args.hidden_size
WINDOWS = (3, 4, 5)        # args.window_size (consecutive -> per-column K formula)
LABEL_NUM = 5              # args.label_num
FEAT = len(WINDOWS) * HIDDEN           # 48 (== sent width == rv_matrix width)
K_MAX = max(WINDOWS)                    # 5
LANES = 128                # lane-dense width for weights / outputs
HID_SHIFT = HIDDEN.bit_length() - 1

assert HIDDEN == 1 << HID_SHIFT, "HIDDEN must be a power of two"
assert L & (L - 1) == 0, "L must be a power of two"
assert WINDOWS == tuple(range(WINDOWS[0], WINDOWS[0] + len(WINDOWS)))
assert 2 * FEAT <= LANES and FEAT + LABEL_NUM <= LANES
assert L - K_MAX + 1 >= 1


# ------------------------------ Pallas kernel ------------------------------ #
def policy_cnn_kernel(x_ref,    # (B*L, D)          f32  activations (batch-major rows)
                      w_ref,    # (K_MAX, D, LANES) bf16 stacked conv weights (zero-padded)
                      b_ref,    # (2, LANES)        f32  row0: conv bias, row1: fc bias
                      rv_ref,   # (B, LANES)        f32  rv_matrix in lanes FEAT..2*FEAT-1
                      fcw_ref,  # (LANES, LANES)    bf16 fc weight (outputs in lanes 48..52)
                      out_ref): # (B, LANES)        f32  [sent | logit | 0] lane-dense slab
    x = x_ref[...]                                        # (B*L, D) f32
    n = x.shape[0]                                        # B*L

    # ---- conv: in-kernel im2col as K_MAX sublane-shifted MXU dots ----
    z = jnp.dot(x.astype(jnp.bfloat16), w_ref[0],
                preferred_element_type=jnp.float32)       # (B*L, LANES) f32
    for k in range(1, K_MAX):
        xk = pltpu.roll(x, shift=n - k, axis=0)           # row r -> x[(r + k) % n]
        z = z + jnp.dot(xk.astype(jnp.bfloat16), w_ref[k],
                        preferred_element_type=jnp.float32)

    # ---- time-validity mask, built in-kernel (no mask DMA) ----
    # Kills tail rows t >= L-K+1 per window group AND any roll-wraparound rows.
    row = jax.lax.broadcasted_iota(jnp.int32, z.shape, 0)
    col = jax.lax.broadcasted_iota(jnp.int32, z.shape, 1)
    t = jnp.bitwise_and(row, L - 1)                       # row % L (time within batch)
    kw = WINDOWS[0] + (col >> HID_SHIFT)                  # per-column window width
    z = jnp.where(t < (L + 1 - kw), z, -1e30)

    # ---- max over time (one sublane reduce), then bias + ReLU (all f32) ----
    # bias is per-column constant so it commutes with max; ReLU is monotone so
    # relu(max(.)) == max(relu(.)), matching the PyTorch order of ops.
    pooled = jnp.max(z.reshape(B, L, LANES), axis=1)      # (B, LANES)
    biases = b_ref[...]                                   # (2, LANES) f32
    sent = jnp.maximum(pooled + biases[0:1, :], 0.0)      # sent in lanes 0..47, rest 0

    # TODO(synk): dropout is identity here (eval-mode inference semantics).

    # ---- fc head: lane-disjoint [sent | rv] slab, one MXU dot, no concat ----
    x_com = sent + rv_ref[...]                            # lanes 0..47 sent, 48..95 rv
    logit = jnp.dot(x_com.astype(jnp.bfloat16), fcw_ref[...],
                    preferred_element_type=jnp.float32)   # nonzero only in lanes 48..52

    # Lane-dense single output slab: sent (0..47) + logit (48..52) + fc bias.
    out_ref[...] = sent + logit + biases[1:2, :]


# --------------------- parameter glue (done ONCE, not per call) ------------- #
def prepare_params(conv_ws, conv_bs, fc_w, fc_b):
    """conv_ws[i]: (K_i, D, H); conv_bs[i]: (1, H); fc_w: (2*FEAT, LABEL_NUM);
    fc_b: (1, LABEL_NUM).  Returns kernel-ready stacked/padded parameters."""
    w_stack = jnp.zeros((K_MAX, D, LANES), jnp.float32)
    for wi, w in enumerate(conv_ws):
        K = w.shape[0]
        w_stack = w_stack.at[:K, :, wi * HIDDEN:(wi + 1) * HIDDEN].set(w)
    w_stack = w_stack.astype(jnp.bfloat16)

    biases = jnp.zeros((2, LANES), jnp.float32)
    biases = biases.at[0, :FEAT].set(jnp.concatenate(conv_bs, axis=1)[0])
    biases = biases.at[1, FEAT:FEAT + LABEL_NUM].set(fc_b[0])

    fcw = jnp.zeros((LANES, LANES), jnp.float32)
    fcw = fcw.at[:2 * FEAT, FEAT:FEAT + LABEL_NUM].set(fc_w)
    fcw = fcw.astype(jnp.bfloat16)
    return w_stack, biases, fcw


# ------------------------------- forward ------------------------------------ #
@jax.jit
def policy_cnn_forward(x_ids, pf1_ids, pf2_ids, rv_matrix,
                       embed_w, pf1_w, pf2_w, w_stack, biases, fcw):
    # Embedding lookups + concat (module glue, plain JAX; fuses under jit).
    word = jnp.take(embed_w, x_ids, axis=0)               # (B, L, WORD_DIM)
    p1 = jnp.take(pf1_w, pf1_ids, axis=0)                 # (B, L, POS_DIM)
    p2 = jnp.take(pf2_w, pf2_ids, axis=0)                 # (B, L, POS_DIM)
    x_all = jnp.concatenate((word, p1, p2), axis=2)       # (B, L, D)

    x2d = x_all.reshape(B * L, D)                         # (B*L, D) f32
    rv_slab = jnp.pad(rv_matrix,
                      ((0, 0), (FEAT, LANES - 2 * FEAT)))  # rv -> lanes 48..95

    vmem = pl.BlockSpec(memory_space=pltpu.MemorySpace.VMEM)
    out = pl.pallas_call(
        policy_cnn_kernel,
        out_shape=jax.ShapeDtypeStruct((B, LANES), jnp.float32),
        in_specs=[vmem] * 5,
        out_specs=vmem,
    )(x2d, w_stack, biases, rv_slab, fcw)

    logit = out[:, FEAT:FEAT + LABEL_NUM]                 # (B, LABEL_NUM)
    sent = out[:, :FEAT]                                  # (B, FEAT)
    return logit, sent


# --------------------------- reference (pure JAX, f32) ---------------------- #
def policy_cnn_reference(x_all, conv_ws, conv_bs, rv_matrix, fc_w, fc_b):
    outs = []
    for w, bias in zip(conv_ws, conv_bs):
        K = w.shape[0]
        l_out = L - K + 1
        acc = jnp.zeros((B, l_out, HIDDEN), jnp.float32)
        for k in range(K):
            acc += jnp.einsum('bld,dh->blh', x_all[:, k:k + l_out, :], w[k])
        acc = jnp.maximum(acc + bias[None, :, :], 0.0)
        outs.append(jnp.max(acc, axis=1))                 # (B, H)
    sent = jnp.concatenate(outs, axis=1)                  # (B, FEAT)
    x_com = jnp.concatenate([sent, rv_matrix], axis=1)    # (B, 2*FEAT)
    logit = x_com @ fc_w + fc_b
    return logit, sent


# ---------------------------------- main ------------------------------------ #
if __name__ == "__main__":
    key = jax.random.PRNGKey(0)
    keys = jax.random.split(key, 16)

    # Deterministic synthetic parameters (shapes implied by the module __init__).
    embed_w = jax.random.normal(keys[0], (VOCAB, WORD_DIM), jnp.float32) * 0.1
    pf1_w = jax.random.normal(keys[1], (POS_NUM, POS_DIM), jnp.float32) * 0.1
    pf2_w = jax.random.normal(keys[2], (POS_NUM, POS_DIM), jnp.float32) * 0.1
    conv_ws, conv_bs = [], []
    for i, K in enumerate(WINDOWS):
        conv_ws.append(jax.random.normal(keys[3 + i], (K, D, HIDDEN),
                                         jnp.float32) * 0.1)
        conv_bs.append(jax.random.normal(keys[6 + i], (1, HIDDEN),
                                         jnp.float32) * 0.1)
    fc_w = jax.random.normal(keys[9], (2 * FEAT, LABEL_NUM), jnp.float32) * 0.1
    fc_b = jax.random.normal(keys[10], (1, LABEL_NUM), jnp.float32) * 0.1

    # Deterministic synthetic inputs (token / position ids, rv_matrix).
    x_ids = jax.random.randint(keys[11], (B, L), 0, VOCAB, jnp.int32)
    pf1_ids = jax.random.randint(keys[12], (B, L), 0, POS_NUM, jnp.int32)
    pf2_ids = jax.random.randint(keys[13], (B, L), 0, POS_NUM, jnp.int32)
    rv_matrix = jax.random.normal(keys[14], (B, FEAT), jnp.float32) * 0.1

    # Parameter-only glue: built ONCE, outside the per-call path.
    w_stack, biases, fcw = prepare_params(conv_ws, conv_bs, fc_w, fc_b)

    logits, sent = policy_cnn_forward(x_ids, pf1_ids, pf2_ids, rv_matrix,
                                      embed_w, pf1_w, pf2_w,
                                      w_stack, biases, fcw)
    logits, sent = jax.block_until_ready((logits, sent))

    # Reference path (full f32).
    word = jnp.take(embed_w, x_ids, axis=0)
    p1 = jnp.take(pf1_w, pf1_ids, axis=0)
    p2 = jnp.take(pf2_w, pf2_ids, axis=0)
    x_all = jnp.concatenate((word, p1, p2), axis=2)
    ref_logits, ref_sent = policy_cnn_reference(x_all, conv_ws, conv_bs,
                                                rv_matrix, fc_w, fc_b)

    assert logits.shape == (B, LABEL_NUM)
    assert sent.shape == (B, FEAT)
    # bf16 MXU operands vs. full-f32 reference -> slightly loosened tolerance.
    assert jnp.allclose(sent, ref_sent, atol=2e-2, rtol=2e-2), "sent mismatch"
    assert jnp.allclose(logits, ref_logits, atol=2e-2, rtol=2e-2), "logit mismatch"

    print("KERNEL_OK")
</pallas_src>

<mosaic_0001>
module attributes {stable_mosaic.version = 11 : i64} {
  func.func @policy_cnn_kernel(%arg0: memref<32x48xf32, #tpu.memory_space<vmem>>, %arg1: memref<5x48x128xbf16, #tpu.memory_space<vmem>>, %arg2: memref<2x128xf32, #tpu.memory_space<vmem>>, %arg3: memref<2x128xf32, #tpu.memory_space<vmem>>, %arg4: memref<128x128xbf16, #tpu.memory_space<vmem>>, %arg5: memref<2x128xf32, #tpu.memory_space<vmem>>) attributes {dimension_semantics = [], scalar_prefetch = 0 : i64, scratch_operands = 0 : i64, tpu.core_type = #tpu.core_type<tc>} {
    %c0 = arith.constant 0 : index
    %c0_0 = arith.constant 0 : index
    %0 = vector.load %arg0[%c0, %c0_0] : memref<32x48xf32, #tpu.memory_space<vmem>>, vector<32x48xf32>
    %1 = arith.truncf %0 : vector<32x48xf32> to vector<32x48xbf16>
    %c0_1 = arith.constant 0 : index
    %c0_2 = arith.constant 0 : index
    %c0_3 = arith.constant 0 : index
    %2 = vector.load %arg1[%c0_1, %c0_2, %c0_3] : memref<5x48x128xbf16, #tpu.memory_space<vmem>>, vector<1x48x128xbf16>
    %3 = vector.shape_cast %2 : vector<1x48x128xbf16> to vector<48x128xbf16>
    %cst = arith.constant dense<0.000000e+00> : vector<32x128xf32>
    %4 = tpu.matmul %1, %3, %cst {dimension_numbers = #tpu.dot_dimension_numbers<[1], [0], [0], [1], [0, 0, 1, 1], [], []>} : vector<32x48xbf16>, vector<48x128xbf16>, vector<32x128xf32> -> vector<32x128xf32>
    %c31_i32 = arith.constant 31 : i32
    %5 = tpu.dynamic_rotate %0 by %c31_i32 dim 0 : vector<32x48xf32>, i32 -> vector<32x48xf32>
    %6 = arith.truncf %5 : vector<32x48xf32> to vector<32x48xbf16>
    %c1 = arith.constant 1 : index
    %c0_4 = arith.constant 0 : index
    %c0_5 = arith.constant 0 : index
    %7 = vector.load %arg1[%c1, %c0_4, %c0_5] : memref<5x48x128xbf16, #tpu.memory_space<vmem>>, vector<1x48x128xbf16>
    %8 = vector.shape_cast %7 : vector<1x48x128xbf16> to vector<48x128xbf16>
    %cst_6 = arith.constant dense<0.000000e+00> : vector<32x128xf32>
    %9 = tpu.matmul %6, %8, %cst_6 {dimension_numbers = #tpu.dot_dimension_numbers<[1], [0], [0], [1], [0, 0, 1, 1], [], []>} : vector<32x48xbf16>, vector<48x128xbf16>, vector<32x128xf32> -> vector<32x128xf32>
    %10 = arith.addf %4, %9 : vector<32x128xf32>
    %c30_i32 = arith.constant 30 : i32
    %11 = tpu.dynamic_rotate %0 by %c30_i32 dim 0 : vector<32x48xf32>, i32 -> vector<32x48xf32>
    %12 = arith.truncf %11 : vector<32x48xf32> to vector<32x48xbf16>
    %c2 = arith.constant 2 : index
    %c0_7 = arith.constant 0 : index
    %c0_8 = arith.constant 0 : index
    %13 = vector.load %arg1[%c2, %c0_7, %c0_8] : memref<5x48x128xbf16, #tpu.memory_space<vmem>>, vector<1x48x128xbf16>
    %14 = vector.shape_cast %13 : vector<1x48x128xbf16> to vector<48x128xbf16>
    %cst_9 = arith.constant dense<0.000000e+00> : vector<32x128xf32>
    %15 = tpu.matmul %12, %14, %cst_9 {dimension_numbers = #tpu.dot_dimension_numbers<[1], [0], [0], [1], [0, 0, 1, 1], [], []>} : vector<32x48xbf16>, vector<48x128xbf16>, vector<32x128xf32> -> vector<32x128xf32>
    %16 = arith.addf %10, %15 : vector<32x128xf32>
    %c29_i32 = arith.constant 29 : i32
    %17 = tpu.dynamic_rotate %0 by %c29_i32 dim 0 : vector<32x48xf32>, i32 -> vector<32x48xf32>
    %18 = arith.truncf %17 : vector<32x48xf32> to vector<32x48xbf16>
    %c3 = arith.constant 3 : index
    %c0_10 = arith.constant 0 : index
    %c0_11 = arith.constant 0 : index
    %19 = vector.load %arg1[%c3, %c0_10, %c0_11] : memref<5x48x128xbf16, #tpu.memory_space<vmem>>, vector<1x48x128xbf16>
    %20 = vector.shape_cast %19 : vector<1x48x128xbf16> to vector<48x128xbf16>
    %cst_12 = arith.constant dense<0.000000e+00> : vector<32x128xf32>
    %21 = tpu.matmul %18, %20, %cst_12 {dimension_numbers = #tpu.dot_dimension_numbers<[1], [0], [0], [1], [0, 0, 1, 1], [], []>} : vector<32x48xbf16>, vector<48x128xbf16>, vector<32x128xf32> -> vector<32x128xf32>
    %22 = arith.addf %16, %21 : vector<32x128xf32>
    %c28_i32 = arith.constant 28 : i32
    %23 = tpu.dynamic_rotate %0 by %c28_i32 dim 0 : vector<32x48xf32>, i32 -> vector<32x48xf32>
    %24 = arith.truncf %23 : vector<32x48xf32> to vector<32x48xbf16>
    %c4 = arith.constant 4 : index
    %c0_13 = arith.constant 0 : index
    %c0_14 = arith.constant 0 : index
    %25 = vector.load %arg1[%c4, %c0_13, %c0_14] : memref<5x48x128xbf16, #tpu.memory_space<vmem>>, vector<1x48x128xbf16>
    %26 = vector.shape_cast %25 : vector<1x48x128xbf16> to vector<48x128xbf16>
    %cst_15 = arith.constant dense<0.000000e+00> : vector<32x128xf32>
    %27 = tpu.matmul %24, %26, %cst_15 {dimension_numbers = #tpu.dot_dimension_numbers<[1], [0], [0], [1], [0, 0, 1, 1], [], []>} : vector<32x48xbf16>, vector<48x128xbf16>, vector<32x128xf32> -> vector<32x128xf32>
    %28 = arith.addf %22, %27 : vector<32x128xf32>
    %29 = tpu.iota {dimensions = array<i32: 0>} : vector<32x128xi32>
    %30 = tpu.iota {dimensions = array<i32: 1>} : vector<32x128xi32>
    %c15_i32 = arith.constant 15 : i32
    %31 = vector.broadcast %c15_i32 : i32 to vector<32x128xi32>
    %32 = arith.andi %29, %31 : vector<32x128xi32>
    %c4_i32 = arith.constant 4 : i32
    %33 = vector.broadcast %c4_i32 : i32 to vector<32x128xi32>
    %34 = arith.shrsi %30, %33 : vector<32x128xi32>
    %c3_i32 = arith.constant 3 : i32
    %35 = vector.broadcast %c3_i32 : i32 to vector<32x128xi32>
    %36 = arith.addi %35, %34 : vector<32x128xi32>
    %c17_i32 = arith.constant 17 : i32
    %37 = vector.broadcast %c17_i32 : i32 to vector<32x128xi32>
    %38 = arith.subi %37, %36 : vector<32x128xi32>
    %39 = arith.cmpi slt, %32, %38 : vector<32x128xi32>
    %cst_16 = arith.constant -1.000000e+30 : f32
    %40 = vector.broadcast %cst_16 : f32 to vector<32x128xf32>
    %41 = arith.select %39, %28, %40 : vector<32x128xi1>, vector<32x128xf32>
    %42 = vector.shape_cast %41 : vector<32x128xf32> to vector<2x16x128xf32>
    %cst_17 = arith.constant dense<0xFF800000> : vector<2x128xf32>
    %43 = vector.multi_reduction <maximumf>, %42, %cst_17 [1] : vector<2x16x128xf32> to vector<2x128xf32>
    %c0_18 = arith.constant 0 : index
    %c0_19 = arith.constant 0 : index
    %44 = vector.load %arg2[%c0_18, %c0_19] : memref<2x128xf32, #tpu.memory_space<vmem>>, vector<2x128xf32>
    %45 = vector.extract_strided_slice %44 {offsets = [0, 0], sizes = [1, 128], strides = [1, 1]} : vector<2x128xf32> to vector<1x128xf32>
    %46 = vector.broadcast %45 : vector<1x128xf32> to vector<2x128xf32>
    %47 = arith.addf %43, %46 : vector<2x128xf32>
    %cst_20 = arith.constant 0.000000e+00 : f32
    %48 = vector.broadcast %cst_20 : f32 to vector<2x128xf32>
    %49 = arith.maximumf %47, %48 : vector<2x128xf32>
    %c0_21 = arith.constant 0 : index
    %c0_22 = arith.constant 0 : index
    %50 = vector.load %arg3[%c0_21, %c0_22] : memref<2x128xf32, #tpu.memory_space<vmem>>, vector<2x128xf32>
    %51 = arith.addf %49, %50 : vector<2x128xf32>
    %52 = arith.truncf %51 : vector<2x128xf32> to vector<2x128xbf16>
    %c0_23 = arith.constant 0 : index
    %c0_24 = arith.constant 0 : index
    %53 = vector.load %arg4[%c0_23, %c0_24] : memref<128x128xbf16, #tpu.memory_space<vmem>>, vector<128x128xbf16>
    %cst_25 = arith.constant dense<0.000000e+00> : vector<2x128xf32>
    %54 = tpu.matmul %52, %53, %cst_25 {dimension_numbers = #tpu.dot_dimension_numbers<[1], [0], [0], [1], [0, 0, 1, 1], [], []>} : vector<2x128xbf16>, vector<128x128xbf16>, vector<2x128xf32> -> vector<2x128xf32>
    %55 = arith.addf %49, %54 : vector<2x128xf32>
    %56 = vector.extract_strided_slice %44 {offsets = [1, 0], sizes = [1, 128], strides = [1, 1]} : vector<2x128xf32> to vector<1x128xf32>
    %57 = vector.broadcast %56 : vector<1x128xf32> to vector<2x128xf32>
    %58 = arith.addf %55, %57 : vector<2x128xf32>
    %c0_26 = arith.constant 0 : index
    %c0_27 = arith.constant 0 : index
    %59 = vector.load %arg5[%c0_26, %c0_27] : memref<2x128xf32, #tpu.memory_space<vmem>>, vector<2x128xf32>
    tpu.vector_store %arg5[%c0_26, %c0_27], %58 {strides = array<i32>} : memref<2x128xf32, #tpu.memory_space<vmem>>, vector<2x128xf32>,
    return
  }
}

</mosaic_0001>

<llo_original>
// kernel: policy_cnn_forward.1
$region0: #{policy_cnn_forward.1}
  #allocation0 [shape = 'u32[]', space=smem, size = 0x4, offset = 0x4, fixed_abs, tag = 'smem constant byte address 0x4 - core index']
  #allocation1 [shape = 'u32[144,128]{1,0:T(1,128)}', space=vmem, size = 0x12000, scoped, tag = 'internal scratch']
  %s0 = inlined_call_operand.vmem [shape: f32[32,48], index: 0, kind: input, shape index: {}]
  %s1 = inlined_call_operand.vmem [shape: bf16[5,48,128], index: 1, kind: input, shape index: {}]
  %s2 = inlined_call_operand.vmem [shape: f32[2,128], index: 2, kind: input, shape index: {}]
  %s3 = inlined_call_operand.vmem [shape: f32[2,128], index: 3, kind: input, shape index: {}]
  %s4 = inlined_call_operand.vmem [shape: bf16[128,128], index: 4, kind: input, shape index: {}]
  %s5 = inlined_call_operand.vmem [shape: f32[2,128], index: 5, kind: output, shape index: {}]
  %s6 = sld [smem:[#allocation0]]
  $region30: #{policy_cnn_forward.1} parent=0
    _
  %s8 = ssub.s32 1, %s6
  %s9 = scalar_select 0, %s8, %s6
  // Predicated region
  $region2: #{policy_cnn_forward.1} parent=0 // pred_check
    _
  $region3: #{policy_cnn_forward.1} parent=0 // pred_check_branch
    %11 = sbr.rel (0) target = $region5
  $region4: #{policy_cnn_forward.1} parent=0 // pred_region
    _
  $region5: #{policy_cnn_forward.1} parent=0 // pred_fallthru
    _
  // Predicated region
  $region6: #{policy_cnn_forward.1} parent=0 // pred_check
    _
  $region7: #{policy_cnn_forward.1} parent=0 // pred_check_branch
    %13 = sbr.rel (0) target = $region9
  $region8: #{policy_cnn_forward.1} parent=0 // pred_region
    _
  $region9: #{policy_cnn_forward.1} parent=0 // pred_fallthru
    _
  // Predicated region
  $region10: #{policy_cnn_forward.1} parent=0 // pred_check
    _
  $region11: #{policy_cnn_forward.1} parent=0 // pred_check_branch
    %15 = sbr.rel (0) target = $region13
  $region12: #{policy_cnn_forward.1} parent=0 // pred_region
    _
  $region13: #{policy_cnn_forward.1} parent=0 // pred_fallthru
    _
  // Predicated region
  $region14: #{policy_cnn_forward.1} parent=0 // pred_check
    _
  $region15: #{policy_cnn_forward.1} parent=0 // pred_check_branch
    %17 = sbr.rel (0) target = $region17
  $region16: #{policy_cnn_forward.1} parent=0 // pred_region
    _
  $region17: #{policy_cnn_forward.1} parent=0 // pred_fallthru
    _
  // Predicated region
  $region18: #{policy_cnn_forward.1} parent=0 // pred_check
    _
  $region19: #{policy_cnn_forward.1} parent=0 // pred_check_branch
    %19 = sbr.rel (0) target = $region21
  $region20: #{policy_cnn_forward.1} parent=0 // pred_region
    _
  $region21: #{policy_cnn_forward.1} parent=0 // pred_fallthru
    _
  %v21 = vld [vmem:[%s0] sm:$0xff]
  %v22 = vld [vmem:[%s0 + $0x8] sm:$0xff]
  %v23 = vld [vmem:[%s0 + $0x10] sm:$0xff]
  %v24 = vld [vmem:[%s0 + $0x18] sm:$0xff]
  %v25 = vpack.c.bf16 %v22, %v21
  %v26 = vpack.c.bf16 %v24, %v23
  %v27 = vld [vmem:[%s1] sm:$0xf]
  %v28 = vld [vmem:[%s1 + $0x4] sm:$0xf]
  %v29 = vld [vmem:[%s1 + $0x8] sm:$0xf]
  %v30 = vld [vmem:[%s1 + $0xc] sm:$0xf]
  %v31 = vld [vmem:[%s1 + $0x10] sm:$0xf]
  %v32 = vld [vmem:[%s1 + $0x14] sm:$0xf]
  %v33 = vrot.slane %v21, 1
  %v34 = vrot.slane %v22, 1
  %v35 = vrot.slane %v23, 1
  %v36 = vrot.slane %v24, 1
  %v37 = vlaneseq
  %v38 = vshrl.u32 %v37, 7
  %vm39 = vcmp.lt.s32.totalorder %v38, 7
  %v40 = vsel %vm39, %v35, %v36
  %v41 = vsel %vm39, %v34, %v35
  %v42 = vsel %vm39, %v33, %v34
  %v43 = vsel %vm39, %v36, %v33
  %v44 = vpack.c.bf16 %v41, %v42
  %v45 = vpack.c.bf16 %v43, %v40
  %s46 = scalar_lea.vmem %s1, 24
  %v47 = vld [vmem:[%s46] sm:$0xf]
  %v48 = vld [vmem:[%s46 + $0x4] sm:$0xf]
  %v49 = vld [vmem:[%s46 + $0x8] sm:$0xf]
  %v50 = vld [vmem:[%s46 + $0xc] sm:$0xf]
  %v51 = vld [vmem:[%s46 + $0x10] sm:$0xf]
  %v52 = vld [vmem:[%s46 + $0x14] sm:$0xf]
  %v59 = vunpack.c.l.b16 %v47
  %v60 = vunpack.c.l.b16 %v48
  %v61 = vunpack.c.l.b16 %v49
  %v62 = vunpack.c.l.b16 %v50
  %v63 = vunpack.c.l.b16 %v51
  %v64 = vunpack.c.l.b16 %v52
  %v65 = vpack.c.b16 %v60, %v59
  %v66 = vpack.c.b16 %v62, %v61
  %v67 = vpack.c.b16 %v64, %v63
  %vm71 = vcmask 392192
  %v73 = vsel %vm71, %v44, 0
  %v76 = vsel %vm71, %v45, 0
  %78 = vmatprep.subr.bf16.mxu0 0
  %79 = vmatpush1.bf16.msra.mxu0 0
  %80 = vmatprep.subr.bf16.mxu0 0
  %81 = vmatpush1.bf16.msra.mxu0 0
  %82 = vmatprep.subr.bf16.mxu0 0
  %83 = vmatpush1.bf16.msra.mxu0 0
  %84 = vmatprep.subr.bf16.mxu0 0
  %85 = vmatpush1.bf16.msra.mxu0 0
  %86 = vmatprep.subr.bf16.mxu0 0
  %87 = vmatpush1.bf16.msra.mxu0 0
  %88 = vmatprep.subr.bf16.mxu0 0
  %89 = vmatpush1.bf16.msra.mxu0 %v67
  %90 = vmatprep.subr.bf16.mxu0 0
  %91 = vmatpush1.bf16.msra.mxu0 %v66
  %92 = vmatprep.subr.bf16.mxu0 0
  %93 = vmatpush1.bf16.msra.mxu0 %v65
  %94 = vmatprep.subr.bf16.mxu0 0
  %95 = vmatpush2.bf16.msra.mxu0 0
  %96 = vmatprep.subr.bf16.mxu0 0
  %97 = vmatpush2.bf16.msra.mxu0 0
  %98 = vmatprep.subr.bf16.mxu0 0
  %99 = vmatpush2.bf16.msra.mxu0 0
  %100 = vmatprep.subr.bf16.mxu0 0
  %101 = vmatpush2.bf16.msra.mxu0 0
  %102 = vmatprep.subr.bf16.mxu0 0
  %103 = vmatpush2.bf16.msra.mxu0 0
  %104 = vmatprep.subr.bf16.mxu0 0
  %105 = vmatpush2.bf16.msra.mxu0 0
  %106 = vmatprep.subr.bf16.mxu0 0
  %107 = vmatpush2.bf16.msra.mxu0 0
  %108 = vmatprep.subr.bf16.mxu0 0
  %109 = vmatpush2.bf16.msra.mxu0 0
  %110 = vmatprep.mubr.bf16.mxu0 0
  %111 = vmatmul.mubr.bf16.gmra.mxu0 %v73
  %v112 = vpop.f32.mrf.mxu0
  %v113 = vadd.f32 0.0, %v112
  %v114 = vpop.f32.mrf.mxu0
  %v115 = vpop.f32.mrf.mxu0
  %v116 = vadd.f32 0.0, %v115
  %v117 = vpop.f32.mrf.mxu0
  %118 = vmatprep.mubr.bf16.mxu0 0
  %119 = vmatmul.mubr.bf16.gmra.mxu0 %v76
  %v120 = vpop.f32.mrf.mxu0
  %v121 = vadd.f32 0.0, %v120
  %v122 = vpop.f32.mrf.mxu0
  %v123 = vpop.f32.mrf.mxu0
  %v124 = vadd.f32 0.0, %v123
  %v125 = vpop.f32.mrf.mxu0
  %126 = vdwg.mxu0
  %v133 = vunpack.c.l.b16 %v27
  %v134 = vunpack.c.l.b16 %v28
  %v135 = vunpack.c.l.b16 %v29
  %v136 = vunpack.c.l.b16 %v30
  %v137 = vunpack.c.l.b16 %v31
  %v138 = vunpack.c.l.b16 %v32
  %v139 = vpack.c.b16 %v134, %v133
  %v140 = vpack.c.b16 %v136, %v135
  %v141 = vpack.c.b16 %v138, %v137
  %v146 = vsel %vm71, %v25, 0
  %v149 = vsel %vm71, %v26, 0
  %151 = vmatprep.subr.bf16.mxu0 0
  %152 = vmatpush1.bf16.msra.mxu0 0
  %153 = vmatprep.subr.bf16.mxu0 0
  %154 = vmatpush1.bf16.msra.mxu0 0
  %155 = vmatprep.subr.bf16.mxu0 0
  %156 = vmatpush1.bf16.msra.mxu0 0
  %157 = vmatprep.subr.bf16.mxu0 0
  %158 = vmatpush1.bf16.msra.mxu0 0
  %159 = vmatprep.subr.bf16.mxu0 0
  %160 = vmatpush1.bf16.msra.mxu0 0
  %161 = vmatprep.subr.bf16.mxu0 0
  %162 = vmatpush1.bf16.msra.mxu0 %v141
  %163 = vmatprep.subr.bf16.mxu0 0
  %164 = vmatpush1.bf16.msra.mxu0 %v140
  %165 = vmatprep.subr.bf16.mxu0 0
  %166 = vmatpush1.bf16.msra.mxu0 %v139
  %167 = vmatprep.subr.bf16.mxu0 0
  %168 = vmatpush2.bf16.msra.mxu0 0
  %169 = vmatprep.subr.bf16.mxu0 0
  %170 = vmatpush2.bf16.msra.mxu0 0
  %171 = vmatprep.subr.bf16.mxu0 0
  %172 = vmatpush2.bf16.msra.mxu0 0
  %173 = vmatprep.subr.bf16.mxu0 0
  %174 = vmatpush2.bf16.msra.mxu0 0
  %175 = vmatprep.subr.bf16.mxu0 0
  %176 = vmatpush2.bf16.msra.mxu0 0
  %177 = vmatprep.subr.bf16.mxu0 0
  %178 = vmatpush2.bf16.msra.mxu0 0
  %179 = vmatprep.subr.bf16.mxu0 0
  %180 = vmatpush2.bf16.msra.mxu0 0
  %181 = vmatprep.subr.bf16.mxu0 0
  %182 = vmatpush2.bf16.msra.mxu0 0
  %183 = vmatprep.mubr.bf16.mxu0 0
  %184 = vmatmul.mubr.bf16.gmra.mxu0 %v146
  %v185 = vpop.f32.mrf.mxu0
  %v186 = vadd.f32 %v113, %v185
  %v187 = vpop.f32.mrf.mxu0
  %v188 = vpop.f32.mrf.mxu0
  %v189 = vadd.f32 %v116, %v188
  %v190 = vpop.f32.mrf.mxu0
  %191 = vmatprep.mubr.bf16.mxu0 0
  %192 = vmatmul.mubr.bf16.gmra.mxu0 %v149
  %v193 = vpop.f32.mrf.mxu0
  %v194 = vadd.f32 %v121, %v193
  %v195 = vpop.f32.mrf.mxu0
  %v196 = vpop.f32.mrf.mxu0
  %v197 = vadd.f32 %v124, %v196
  %v198 = vpop.f32.mrf.mxu0
  %199 = vdwg.mxu0
  %v200 = vrot.slane %v21, 2
  %v201 = vrot.slane %v22, 2
  %v202 = vrot.slane %v23, 2
  %v203 = vrot.slane %v24, 2
  %vm204 = vcmp.lt.s32.totalorder %v38, 6
  %v205 = vsel %vm204, %v202, %v203
  %v206 = vsel %vm204, %v201, %v202
  %v207 = vsel %vm204, %v200, %v201
  %v208 = vsel %vm204, %v203, %v200
  %v209 = vpack.c.bf16 %v206, %v207
  %v210 = vpack.c.bf16 %v208, %v205
  %s211 = scalar_lea.vmem %s1, 48
  %v212 = vld [vmem:[%s211] sm:$0xf]
  %v213 = vld [vmem:[%s211 + $0x4] sm:$0xf]
  %v214 = vld [vmem:[%s211 + $0x8] sm:$0xf]
  %v215 = vld [vmem:[%s211 + $0xc] sm:$0xf]
  %v216 = vld [vmem:[%s211 + $0x10] sm:$0xf]
  %v217 = vld [vmem:[%s211 + $0x14] sm:$0xf]
  %v224 = vunpack.c.l.b16 %v212
  %v225 = vunpack.c.l.b16 %v213
  %v226 = vunpack.c.l.b16 %v214
  %v227 = vunpack.c.l.b16 %v215
  %v228 = vunpack.c.l.b16 %v216
  %v229 = vunpack.c.l.b16 %v217
  %v230 = vpack.c.b16 %v225, %v224
  %v231 = vpack.c.b16 %v227, %v226
  %v232 = vpack.c.b16 %v229, %v228
  %v237 = vsel %vm71, %v209, 0
  %v240 = vsel %vm71, %v210, 0
  %242 = vmatprep.subr.bf16.mxu0 0
  %243 = vmatpush1.bf16.msra.mxu0 0
  %244 = vmatprep.subr.bf16.mxu0 0
  %245 = vmatpush1.bf16.msra.mxu0 0
  %246 = vmatprep.subr.bf16.mxu0 0
  %247 = vmatpush1.bf16.msra.mxu0 0
  %248 = vmatprep.subr.bf16.mxu0 0
  %249 = vmatpush1.bf16.msra.mxu0 0
  %250 = vmatprep.subr.bf16.mxu0 0
  %251 = vmatpush1.bf16.msra.mxu0 0
  %252 = vmatprep.subr.bf16.mxu0 0
  %253 = vmatpush1.bf16.msra.mxu0 %v232
  %254 = vmatprep.subr.bf16.mxu0 0
  %255 = vmatpush1.bf16.msra.mxu0 %v231
  %256 = vmatprep.subr.bf16.mxu0 0
  %257 = vmatpush1.bf16.msra.mxu0 %v230
  %258 = vmatprep.subr.bf16.mxu0 0
  %259 = vmatpush2.bf16.msra.mxu0 0
  %260 = vmatprep.subr.bf16.mxu0 0
  %261 = vmatpush2.bf16.msra.mxu0 0
  %262 = vmatprep.subr.bf16.mxu0 0
  %263 = vmatpush2.bf16.msra.mxu0 0
  %264 = vmatprep.subr.bf16.mxu0 0
  %265 = vmatpush2.bf16.msra.mxu0 0
  %266 = vmatprep.subr.bf16.mxu0 0
  %267 = vmatpush2.bf16.msra.mxu0 0
  %268 = vmatprep.subr.bf16.mxu0 0
  %269 = vmatpush2.bf16.msra.mxu0 0
  %270 = vmatprep.subr.bf16.mxu0 0
  %271 = vmatpush2.bf16.msra.mxu0 0
  %272 = vmatprep.subr.bf16.mxu0 0
  %273 = vmatpush2.bf16.msra.mxu0 0
  %274 = vmatprep.mubr.bf16.mxu0 0
  %275 = vmatmul.mubr.bf16.gmra.mxu0 %v237
  %v276 = vpop.f32.mrf.mxu0
  %v277 = vadd.f32 0.0, %v276
  %v278 = vpop.f32.mrf.mxu0
  %v279 = vpop.f32.mrf.mxu0
  %v280 = vadd.f32 0.0, %v279
  %v281 = vpop.f32.mrf.mxu0
  %282 = vmatprep.mubr.bf16.mxu0 0
  %283 = vmatmul.mubr.bf16.gmra.mxu0 %v240
  %v284 = vpop.f32.mrf.mxu0
  %v285 = vadd.f32 0.0, %v284
  %v286 = vpop.f32.mrf.mxu0
  %v287 = vpop.f32.mrf.mxu0
  %v288 = vadd.f32 0.0, %v287
  %v289 = vpop.f32.mrf.mxu0
  %290 = vdwg.mxu0
  %v291 = vadd.f32 %v186, %v277
  %v292 = vadd.f32 %v189, %v280
  %v293 = vadd.f32 %v194, %v285
  %v294 = vadd.f32 %v197, %v288
  %v295 = vrot.slane %v21, 3
  %v296 = vrot.slane %v22, 3
  %v297 = vrot.slane %v23, 3
  %v298 = vrot.slane %v24, 3
  %vm299 = vcmp.lt.s32.totalorder %v38, 5
  %v300 = vsel %vm299, %v297, %v298
  %v301 = vsel %vm299, %v296, %v297
  %v302 = vsel %vm299, %v295, %v296
  %v303 = vsel %vm299, %v298, %v295
  %v304 = vpack.c.bf16 %v301, %v302
  %v305 = vpack.c.bf16 %v303, %v300
  %s306 = scalar_lea.vmem %s1, 72
  %v307 = vld [vmem:[%s306] sm:$0xf]
  %v308 = vld [vmem:[%s306 + $0x4] sm:$0xf]
  %v309 = vld [vmem:[%s306 + $0x8] sm:$0xf]
  %v310 = vld [vmem:[%s306 + $0xc] sm:$0xf]
  %v311 = vld [vmem:[%s306 + $0x10] sm:$0xf]
  %v312 = vld [vmem:[%s306 + $0x14] sm:$0xf]
  %v319 = vunpack.c.l.b16 %v307
  %v320 = vunpack.c.l.b16 %v308
  %v321 = vunpack.c.l.b16 %v309
  %v322 = vunpack.c.l.b16 %v310
  %v323 = vunpack.c.l.b16 %v311
  %v324 = vunpack.c.l.b16 %v312
  %v325 = vpack.c.b16 %v320, %v319
  %v326 = vpack.c.b16 %v322, %v321
  %v327 = vpack.c.b16 %v324, %v323
  %v332 = vsel %vm71, %v304, 0
  %v335 = vsel %vm71, %v305, 0
  %337 = vmatprep.subr.bf16.mxu0 0
  %338 = vmatpush1.bf16.msra.mxu0 0
  %339 = vmatprep.subr.bf16.mxu0 0
  %340 = vmatpush1.bf16.msra.mxu0 0
  %341 = vmatprep.subr.bf16.mxu0 0
  %342 = vmatpush1.bf16.msra.mxu0 0
  %343 = vmatprep.subr.bf16.mxu0 0
  %344 = vmatpush1.bf16.msra.mxu0 0
  %345 = vmatprep.subr.bf16.mxu0 0
  %346 = vmatpush1.bf16.msra.mxu0 0
  %347 = vmatprep.subr.bf16.mxu0 0
  %348 = vmatpush1.bf16.msra.mxu0 %v327
  %349 = vmatprep.subr.bf16.mxu0 0
  %350 = vmatpush1.bf16.msra.mxu0 %v326
  %351 = vmatprep.subr.bf16.mxu0 0
  %352 = vmatpush1.bf16.msra.mxu0 %v325
  %353 = vmatprep.subr.bf16.mxu0 0
  %354 = vmatpush2.bf16.msra.mxu0 0
  %355 = vmatprep.subr.bf16.mxu0 0
  %356 = vmatpush2.bf16.msra.mxu0 0
  %357 = vmatprep.subr.bf16.mxu0 0
  %358 = vmatpush2.bf16.msra.mxu0 0
  %359 = vmatprep.subr.bf16.mxu0 0
  %360 = vmatpush2.bf16.msra.mxu0 0
  %361 = vmatprep.subr.bf16.mxu0 0
  %362 = vmatpush2.bf16.msra.mxu0 0
  %363 = vmatprep.subr.bf16.mxu0 0
  %364 = vmatpush2.bf16.msra.mxu0 0
  %365 = vmatprep.subr.bf16.mxu0 0
  %366 = vmatpush2.bf16.msra.mxu0 0
  %367 = vmatprep.subr.bf16.mxu0 0
  %368 = vmatpush2.bf16.msra.mxu0 0
  %369 = vmatprep.mubr.bf16.mxu0 0
  %370 = vmatmul.mubr.bf16.gmra.mxu0 %v332
  %v371 = vpop.f32.mrf.mxu0
  %v372 = vadd.f32 0.0, %v371
  %v373 = vpop.f32.mrf.mxu0
  %v374 = vpop.f32.mrf.mxu0
  %v375 = vadd.f32 0.0, %v374
  %v376 = vpop.f32.mrf.mxu0
  %377 = vmatprep.mubr.bf16.mxu0 0
  %378 = vmatmul.mubr.bf16.gmra.mxu0 %v335
  %v379 = vpop.f32.mrf.mxu0
  %v380 = vadd.f32 0.0, %v379
  %v381 = vpop.f32.mrf.mxu0
  %v382 = vpop.f32.mrf.mxu0
  %v383 = vadd.f32 0.0, %v382
  %v384 = vpop.f32.mrf.mxu0
  %385 = vdwg.mxu0
  %v386 = vadd.f32 %v291, %v372
  %v387 = vadd.f32 %v292, %v375
  %v388 = vadd.f32 %v293, %v380
  %v389 = vadd.f32 %v294, %v383
  %v390 = vrot.slane %v21, 4
  %v391 = vrot.slane %v22, 4
  %v392 = vrot.slane %v23, 4
  %v393 = vrot.slane %v24, 4
  %vm394 = vcmp.lt.s32.totalorder %v38, 4
  %v395 = vsel %vm394, %v392, %v393
  %v396 = vsel %vm394, %v391, %v392
  %v397 = vsel %vm394, %v390, %v391
  %v398 = vsel %vm394, %v393, %v390
  %v399 = vpack.c.bf16 %v396, %v397
  %v400 = vpack.c.bf16 %v398, %v395
  %s401 = scalar_lea.vmem %s1, 96
  %v402 = vld [vmem:[%s401] sm:$0xf]
  %v403 = vld [vmem:[%s401 + $0x4] sm:$0xf]
  %v404 = vld [vmem:[%s401 + $0x8] sm:$0xf]
  %v405 = vld [vmem:[%s401 + $0xc] sm:$0xf]
  %v406 = vld [vmem:[%s401 + $0x10] sm:$0xf]
  %v407 = vld [vmem:[%s401 + $0x14] sm:$0xf]
  %v414 = vunpack.c.l.b16 %v402
  %v415 = vunpack.c.l.b16 %v403
  %v416 = vunpack.c.l.b16 %v404
  %v417 = vunpack.c.l.b16 %v405
  %v418 = vunpack.c.l.b16 %v406
  %v419 = vunpack.c.l.b16 %v407
  %v420 = vpack.c.b16 %v415, %v414
  %v421 = vpack.c.b16 %v417, %v416
  %v422 = vpack.c.b16 %v419, %v418
  %v427 = vsel %vm71, %v399, 0
  %v430 = vsel %vm71, %v400, 0
  %432 = vmatprep.subr.bf16.mxu0 0
  %433 = vmatpush1.bf16.msra.mxu0 0
  %434 = vmatprep.subr.bf16.mxu0 0
  %435 = vmatpush1.bf16.msra.mxu0 0
  %436 = vmatprep.subr.bf16.mxu0 0
  %437 = vmatpush1.bf16.msra.mxu0 0
  %438 = vmatprep.subr.bf16.mxu0 0
  %439 = vmatpush1.bf16.msra.mxu0 0
  %440 = vmatprep.subr.bf16.mxu0 0
  %441 = vmatpush1.bf16.msra.mxu0 0
  %442 = vmatprep.subr.bf16.mxu0 0
  %443 = vmatpush1.bf16.msra.mxu0 %v422
  %444 = vmatprep.subr.bf16.mxu0 0
  %445 = vmatpush1.bf16.msra.mxu0 %v421
  %446 = vmatprep.subr.bf16.mxu0 0
  %447 = vmatpush1.bf16.msra.mxu0 %v420
  %448 = vmatprep.subr.bf16.mxu0 0
  %449 = vmatpush2.bf16.msra.mxu0 0
  %450 = vmatprep.subr.bf16.mxu0 0
  %451 = vmatpush2.bf16.msra.mxu0 0
  %452 = vmatprep.subr.bf16.mxu0 0
  %453 = vmatpush2.bf16.msra.mxu0 0
  %454 = vmatprep.subr.bf16.mxu0 0
  %455 = vmatpush2.bf16.msra.mxu0 0
  %456 = vmatprep.subr.bf16.mxu0 0
  %457 = vmatpush2.bf16.msra.mxu0 0
  %458 = vmatprep.subr.bf16.mxu0 0
  %459 = vmatpush2.bf16.msra.mxu0 0
  %460 = vmatprep.subr.bf16.mxu0 0
  %461 = vmatpush2.bf16.msra.mxu0 0
  %462 = vmatprep.subr.bf16.mxu0 0
  %463 = vmatpush2.bf16.msra.mxu0 0
  %464 = vmatprep.mubr.bf16.mxu0 0
  %465 = vmatmul.mubr.bf16.gmra.mxu0 %v427
  %v466 = vpop.f32.mrf.mxu0
  %v467 = vadd.f32 0.0, %v466
  %v468 = vpop.f32.mrf.mxu0
  %v469 = vpop.f32.mrf.mxu0
  %v470 = vadd.f32 0.0, %v469
  %v471 = vpop.f32.mrf.mxu0
  %472 = vmatprep.mubr.bf16.mxu0 0
  %473 = vmatmul.mubr.bf16.gmra.mxu0 %v430
  %v474 = vpop.f32.mrf.mxu0
  %v475 = vadd.f32 0.0, %v474
  %v476 = vpop.f32.mrf.mxu0
  %v477 = vpop.f32.mrf.mxu0
  %v478 = vadd.f32 0.0, %v477
  %v479 = vpop.f32.mrf.mxu0
  %480 = vdwg.mxu0
  %v481 = vadd.f32 %v386, %v467
  %v482 = vadd.f32 %v387, %v470
  %v483 = vadd.f32 %v388, %v475
  %v484 = vadd.f32 %v389, %v478
  %v485 = vadd.s32 %v38, 8
  %v486 = vadd.s32 %v38, 16
  %v487 = vadd.s32 %v38, 24
  %v488 = vlaneseq
  %v489 = vand.u32 %v488, 127
  %v490 = vand.u32 %v38, 15
  %v491 = vand.u32 %v485, 15
  %v492 = vand.u32 %v486, 15
  %v493 = vand.u32 %v487, 15
  %v494 = vshra.s32 %v489, 4
  %v495 = vadd.s32 %v494, 3
  %v496 = vsub.s32 17, %v495
  %vm497 = vcmp.lt.s32.totalorder %v490, %v496
  %vm498 = vcmp.lt.s32.totalorder %v491, %v496
  %vm499 = vcmp.lt.s32.totalorder %v492, %v496
  %vm500 = vcmp.lt.s32.totalorder %v493, %v496
  %v501 = vsel %vm497, %v481, -1e+30
  %v502 = vsel %vm498, %v482, -1e+30
  %v503 = vsel %vm499, %v483, -1e+30
  %v504 = vsel %vm500, %v484, -1e+30
  %v505 = vmax.f32 %v501, %v502
  %v506 = vrot.slane %v505, 4
  %v507 = vmax.f32 %v505, %v506
  %v508 = vrot.slane %v507, 2
  %v509 = vmax.f32 %v507, %v508
  %v510 = vrot.slane %v509, 1
  %v511 = vmax.f32 %v509, %v510
  %v512 = vmax.f32 %v503, %v504
  %v513 = vrot.slane %v512, 4
  %v514 = vmax.f32 %v512, %v513
  %v515 = vrot.slane %v514, 2
  %v516 = vmax.f32 %v514, %v515
  %v517 = vrot.slane %v516, 1
  %v518 = vmax.f32 %v516, %v517
  %v519 = vld [vmem:[%s2] sm:$0x3]
  %v520 = vlaneseq
  %v521 = vshrl.u32 %v520, 7
  %v522 = vsub.s32 0, %v521
  %v523 = vrot.slane %v519, %v522
  %v524 = vadd.f32 %v511, %v523
  %v525 = vadd.f32 %v518, %v523
  %v526 = vmax.f32 %v524, 0.0
  %v527 = vmax.f32 %v525, 0.0
  %v528 = vld [vmem:[%s3] sm:$0x3]
  %v530 = vrot.slane %v528, 1
  %v533 = vadd.f32 %v526, %v528
  %v534 = vadd.f32 %v527, %v530
  %v535 = vpack.c.bf16 %v533, %v533
  %v536 = vpack.c.bf16 %v534, %v534
  %v537 = vld [vmem:[%s4] sm:$0xf]
  %v538 = vld [vmem:[%s4 + $0x4] sm:$0xf]
  %v539 = vld [vmem:[%s4 + $0x8] sm:$0xf]
  %v540 = vld [vmem:[%s4 + $0xc] sm:$0xf]
  %v541 = vld [vmem:[%s4 + $0x10] sm:$0xf]
  %v542 = vld [vmem:[%s4 + $0x14] sm:$0xf]
  %v543 = vld [vmem:[%s4 + $0x18] sm:$0xf]
  %v544 = vld [vmem:[%s4 + $0x1c] sm:$0xf]
  %v545 = vld [vmem:[%s4 + $0x20] sm:$0xf]
  %v546 = vld [vmem:[%s4 + $0x24] sm:$0xf]
  %v547 = vld [vmem:[%s4 + $0x28] sm:$0xf]
  %v548 = vld [vmem:[%s4 + $0x2c] sm:$0xf]
  %v549 = vld [vmem:[%s4 + $0x30] sm:$0xf]
  %v550 = vld [vmem:[%s4 + $0x34] sm:$0xf]
  %v551 = vld [vmem:[%s4 + $0x38] sm:$0xf]
  %v552 = vld [vmem:[%s4 + $0x3c] sm:$0xf]
  %v555 = vunpack.c.l.b16 %v535
  %v556 = vunpack.c.l.b16 %v536
  %v557 = vrot.slane %v556, 7
  %vm558 = vcmask 1041409
  %v559 = vsel %vm558, %v557, %v555
  %v560 = vpack.c.b16 %v559, %v559
  %v578 = vunpack.c.l.b16 %v537
  %v579 = vunpack.c.l.b16 %v538
  %v580 = vunpack.c.l.b16 %v539
  %v581 = vunpack.c.l.b16 %v540
  %v582 = vunpack.c.l.b16 %v541
  %v583 = vunpack.c.l.b16 %v542
  %v584 = vunpack.c.l.b16 %v543
  %v585 = vunpack.c.l.b16 %v544
  %v586 = vunpack.c.l.b16 %v545
  %v587 = vunpack.c.l.b16 %v546
  %v588 = vunpack.c.l.b16 %v547
  %v589 = vunpack.c.l.b16 %v548
  %v590 = vunpack.c.l.b16 %v549
  %v591 = vunpack.c.l.b16 %v550
  %v592 = vunpack.c.l.b16 %v551
  %v593 = vunpack.c.l.b16 %v552
  %v594 = vpack.c.b16 %v579, %v578
  %v595 = vpack.c.b16 %v581, %v580
  %v596 = vpack.c.b16 %v583, %v582
  %v597 = vpack.c.b16 %v585, %v584
  %v598 = vpack.c.b16 %v587, %v586
  %v599 = vpack.c.b16 %v589, %v588
  %v600 = vpack.c.b16 %v591, %v590
  %v601 = vpack.c.b16 %v593, %v592
  %610 = vmatprep.subr.bf16.mxu0 0
  %611 = vmatpush1.bf16.msra.mxu0 %v601
  %612 = vmatprep.subr.bf16.mxu0 0
  %613 = vmatpush1.bf16.msra.mxu0 %v600
  %614 = vmatprep.subr.bf16.mxu0 0
  %615 = vmatpush1.bf16.msra.mxu0 %v599
  %616 = vmatprep.subr.bf16.mxu0 0
  %617 = vmatpush1.bf16.msra.mxu0 %v598
  %618 = vmatprep.subr.bf16.mxu0 0
  %619 = vmatpush1.bf16.msra.mxu0 %v597
  %620 = vmatprep.subr.bf16.mxu0 0
  %621 = vmatpush1.bf16.msra.mxu0 %v596
  %622 = vmatprep.subr.bf16.mxu0 0
  %623 = vmatpush1.bf16.msra.mxu0 %v595
  %624 = vmatprep.subr.bf16.mxu0 0
  %625 = vmatpush1.bf16.msra.mxu0 %v594
  %626 = vmatprep.subr.bf16.mxu0 0
  %627 = vmatpush2.bf16.msra.mxu0 0
  %628 = vmatprep.subr.bf16.mxu0 0
  %629 = vmatpush2.bf16.msra.mxu0 0
  %630 = vmatprep.subr.bf16.mxu0 0
  %631 = vmatpush2.bf16.msra.mxu0 0
  %632 = vmatprep.subr.bf16.mxu0 0
  %633 = vmatpush2.bf16.msra.mxu0 0
  %634 = vmatprep.subr.bf16.mxu0 0
  %635 = vmatpush2.bf16.msra.mxu0 0
  %636 = vmatprep.subr.bf16.mxu0 0
  %637 = vmatpush2.bf16.msra.mxu0 0
  %638 = vmatprep.subr.bf16.mxu0 0
  %639 = vmatpush2.bf16.msra.mxu0 0
  %640 = vmatprep.subr.bf16.mxu0 0
  %641 = vmatpush2.bf16.msra.mxu0 0
  %642 = vmatprep.mubr.bf16.mxu0 0
  %643 = vmatmul.mubr.bf16.gmra.mxu0 %v560
  %v644 = vpop.f32.mrf.mxu0
  %v645 = vadd.f32 0.0, %v644
  %v646 = vpop.f32.mrf.mxu0
  %v647 = vpop.f32.mrf.mxu0
  %v648 = vpop.f32.mrf.mxu0
  %649 = vdwg.mxu0
  %v651 = vrot.slane %v645, 1
  %v654 = vadd.f32 %v526, %v645
  %v655 = vadd.f32 %v527, %v651
  %v656 = vlaneseq
  %v657 = vshrl.u32 %v656, 7
  %v658 = vsub.s32 1, %v657
  %v659 = vrot.slane %v519, %v658
  %v660 = vadd.f32 %v654, %v659
  %v661 = vadd.f32 %v655, %v659
  %v664 = vrot.slane %v661, 7
  %v665 = vsel %vm558, %v664, %v660
  %667 = vst [vmem:[%s5] sm:$0x3] %v665
  // Predicated region
  $region22: #{policy_cnn_forward.1} parent=0 // pred_check
    _
  $region23: #{policy_cnn_forward.1} parent=0 // pred_check_branch
    %669 = sbr.rel (0) target = $region25
  $region24: #{policy_cnn_forward.1} parent=0 // pred_region
    _
  $region25: #{policy_cnn_forward.1} parent=0 // pred_fallthru
    _
  // Predicated region
  $region26: #{policy_cnn_forward.1} parent=0 // pred_check
    _
  $region27: #{policy_cnn_forward.1} parent=0 // pred_check_branch
    %671 = sbr.rel (0) target = $region29
  $region28: #{policy_cnn_forward.1} parent=0 // pred_region
    _
  $region29: #{policy_cnn_forward.1} parent=0 // pred_fallthru
    _

</llo_original>
